<compile_context>
chip_gen: v5e
topology: v5e:2x2
jax: 0.10.0
libtpu: 0.0.40
codegen_flags: <defaults>
</compile_context>

<pallas_src>
import jax
import jax.numpy as jnp
from jax.experimental import pallas as pl
from jax.experimental.pallas import tpu as pltpu


# ------------------------------------------------------------------
# Pallas kernel: out = x * cos + rotate_half(x) * sin
# rotate_half(x) = concat(-x2, x1); implemented as a half-width lane roll
# with the minus sign pre-folded into sin_signed = concat(-sin_h, +sin_h).
# Blocks are 2-D (seq_tile, head_dim); batch is a squeezed grid dim.
# ------------------------------------------------------------------
def _rope_kernel(q_ref, k_ref, cos_ref, sin_ref, q_out_ref, k_out_ref):
    cos = cos_ref[...]        # (TS, D)
    sin_s = sin_ref[...]      # (TS, D), sign-folded
    half = q_ref.shape[-1] // 2

    def apply(x):
        # roll by D//2 swaps the two halves (XLU, effectively free here);
        # the negation of the first half lives in sin_s, so the VPU does
        # only 2 muls + 1 add per element and we issue one full-width store.
        return x * cos + pltpu.roll(x, shift=half, axis=1) * sin_s

    q_out_ref[...] = apply(q_ref[...])
    k_out_ref[...] = apply(k_ref[...])


# ------------------------------------------------------------------
# Wrapper: inv_freq "parameter" + cached cos/sin tables in plain JAX (glue),
# the rotation itself inside the Pallas kernel.
# ------------------------------------------------------------------
class RotaryEmbedding:
    def __init__(self, head_dim: int, base: float = 10000.0):
        assert head_dim % 2 == 0, "head_dim must be even for RoPE"
        self.head_dim = head_dim
        # deterministic "parameter" exactly as in the PyTorch __init__
        self.inv_freq = 1.0 / (
            base ** (jnp.arange(0, head_dim, 2, dtype=jnp.float32) / head_dim)
        )
        # cache (like the PyTorch module) keyed on (seq_len, dtype)
        self._cache_key = None
        self._cos_cached = None
        self._sin_signed_cached = None

    def _cos_sin(self, seq_len: int, dtype):
        key = (seq_len, jnp.dtype(dtype))
        if key != self._cache_key:
            t = jnp.arange(seq_len, dtype=jnp.float32)
            freqs = jnp.einsum("i,j->ij", t, self.inv_freq)       # (S, D/2) f32
            emb = jnp.concatenate((freqs, freqs), axis=-1)        # (S, D) f32
            # Angle + trig in f32, cast only the final tables (matches PyTorch).
            cos = jnp.cos(emb)
            sin = jnp.sin(emb)
            half = self.head_dim // 2
            sin_signed = jnp.concatenate((-sin[:, :half], sin[:, half:]), axis=-1)
            self._cos_cached = cos[None, :, :].astype(dtype)              # (1, S, D)
            self._sin_signed_cached = sin_signed[None, :, :].astype(dtype)
            self._cache_key = key
        return self._cos_cached, self._sin_signed_cached

    def __call__(self, q, k, *, seq_tile: int = 1024, inplace: bool = False):
        batch, seq_len, head_dim = q.shape
        assert head_dim == self.head_dim
        cos, sin_signed = self._cos_sin(seq_len, q.dtype)

        # ~1024-row seq tiles amortize per-grid-step overhead while keeping
        # peak VMEM (6 streams x 2 buffers) at a few MiB on every generation.
        # On v7x even larger tiles help; a tile dividing seq_len avoids padding.
        ts = seq_len if seq_len <= seq_tile else seq_tile

        # Grid: seq tiles outer ("parallel" -> megacore shards the big axis),
        # batch inner ("arbitrary"). cos/sin block index only depends on s, so
        # it is unchanged across the inner batch loop and Pallas skips re-DMA.
        grid = (pl.cdiv(seq_len, ts), batch)

        qk_spec = pl.BlockSpec((None, ts, head_dim), lambda s, b: (b, s, 0))
        cs_spec = pl.BlockSpec((None, ts, head_dim), lambda s, b: (0, s, 0))

        # Optional in-place rewrite of q/k (safe: RoPE is elementwise per row).
        io_aliases = {0: 0, 1: 1} if inplace else {}

        q_out, k_out = pl.pallas_call(
            _rope_kernel,
            out_shape=(
                jax.ShapeDtypeStruct(q.shape, q.dtype),
                jax.ShapeDtypeStruct(k.shape, k.dtype),
            ),
            grid=grid,
            in_specs=[qk_spec, qk_spec, cs_spec, cs_spec],
            out_specs=(qk_spec, qk_spec),
            input_output_aliases=io_aliases,
            compiler_params=pltpu.CompilerParams(
                dimension_semantics=("parallel", "arbitrary"),
                # Headroom for 1-2K-row f32 tiles; v5e's scoped default (16 MiB)
                # is too tight, 32 MiB is safe on v5e/v6e/v7x.
                vmem_limit_bytes=32 * 1024 * 1024,
            ),
        )(q, k, cos, sin_signed)
        return q_out, k_out


# ------------------------------------------------------------------
# Pure-JAX reference (mirrors the PyTorch module) for a correctness check
# ------------------------------------------------------------------
def _rotate_half_ref(x):
    d = x.shape[-1]
    return jnp.concatenate((-x[..., d // 2:], x[..., : d // 2]), axis=-1)


def _rope_ref(q, k, inv_freq):
    _, seq_len, _ = q.shape
    t = jnp.arange(seq_len, dtype=jnp.float32)
    freqs = jnp.einsum("i,j->ij", t, inv_freq)
    emb = jnp.concatenate((freqs, freqs), axis=-1)
    cos = jnp.cos(emb)[None, :, :].astype(q.dtype)
    sin = jnp.sin(emb)[None, :, :].astype(q.dtype)
    return (q * cos + _rotate_half_ref(q) * sin,
            k * cos + _rotate_half_ref(k) * sin)


if __name__ == "__main__":
    # small but lane-dense shape: head_dim = 128 fills full vreg lanes
    batch, seq_len, head_dim = 2, 16, 128
    key = jax.random.PRNGKey(0)
    kq, kk = jax.random.split(key)
    q = jax.random.normal(kq, (batch, seq_len, head_dim), dtype=jnp.float32)
    k = jax.random.normal(kk, (batch, seq_len, head_dim), dtype=jnp.float32)

    rope = RotaryEmbedding(head_dim)

    # reference first (so an inplace=True run would also be safe to test)
    q_ref, k_ref = _rope_ref(q, k, rope.inv_freq)

    q_out, k_out = rope(q, k)
    q_out = jax.block_until_ready(q_out)
    k_out = jax.block_until_ready(k_out)

    assert jnp.allclose(q_out, q_ref, atol=1e-5, rtol=1e-5)
    assert jnp.allclose(k_out, k_ref, atol=1e-5, rtol=1e-5)

    print("KERNEL_OK")
</pallas_src>

<mosaic_0001>
module attributes {stable_mosaic.version = 11 : i64} {
  func.func @_rope_kernel(%arg0: i32, %arg1: i32, %arg2: memref<1x16x128xf32, #tpu.memory_space<vmem>>, %arg3: memref<1x16x128xf32, #tpu.memory_space<vmem>>, %arg4: memref<1x16x128xf32, #tpu.memory_space<vmem>>, %arg5: memref<1x16x128xf32, #tpu.memory_space<vmem>>, %arg6: memref<1x16x128xf32, #tpu.memory_space<vmem>>, %arg7: memref<1x16x128xf32, #tpu.memory_space<vmem>>) attributes {dimension_semantics = [#tpu.dimension_semantics<parallel>, #tpu.dimension_semantics<arbitrary>], iteration_bounds = array<i64: 1, 2>, scalar_prefetch = 0 : i64, scratch_operands = 0 : i64, tpu.core_type = #tpu.core_type<tc>, window_params = [{transform_indices = @transform_0, window_bounds = array<i64: 1, 16, 128>}, {transform_indices = @transform_1, window_bounds = array<i64: 1, 16, 128>}, {transform_indices = @transform_2, window_bounds = array<i64: 1, 16, 128>}, {transform_indices = @transform_3, window_bounds = array<i64: 1, 16, 128>}, {transform_indices = @transform_4, window_bounds = array<i64: 1, 16, 128>}, {transform_indices = @transform_5, window_bounds = array<i64: 1, 16, 128>}]} {
    %c0 = arith.constant 0 : index
    %c0_0 = arith.constant 0 : index
    %c0_1 = arith.constant 0 : index
    %0 = vector.load %arg4[%c0, %c0_0, %c0_1] : memref<1x16x128xf32, #tpu.memory_space<vmem>>, vector<1x16x128xf32>
    %1 = vector.shape_cast %0 : vector<1x16x128xf32> to vector<16x128xf32>
    %c0_2 = arith.constant 0 : index
    %c0_3 = arith.constant 0 : index
    %c0_4 = arith.constant 0 : index
    %2 = vector.load %arg5[%c0_2, %c0_3, %c0_4] : memref<1x16x128xf32, #tpu.memory_space<vmem>>, vector<1x16x128xf32>
    %3 = vector.shape_cast %2 : vector<1x16x128xf32> to vector<16x128xf32>
    %c0_5 = arith.constant 0 : index
    %c0_6 = arith.constant 0 : index
    %c0_7 = arith.constant 0 : index
    %4 = vector.load %arg2[%c0_5, %c0_6, %c0_7] : memref<1x16x128xf32, #tpu.memory_space<vmem>>, vector<1x16x128xf32>
    %5 = vector.shape_cast %4 : vector<1x16x128xf32> to vector<16x128xf32>
    %6 = arith.mulf %5, %1 : vector<16x128xf32>
    %c64_i32 = arith.constant 64 : i32
    %7 = tpu.dynamic_rotate %5 by %c64_i32 dim 1 : vector<16x128xf32>, i32 -> vector<16x128xf32>
    %8 = arith.mulf %7, %3 : vector<16x128xf32>
    %9 = arith.addf %6, %8 : vector<16x128xf32>
    %c0_8 = arith.constant 0 : index
    %c0_9 = arith.constant 0 : index
    %c0_10 = arith.constant 0 : index
    %10 = vector.load %arg6[%c0_8, %c0_9, %c0_10] : memref<1x16x128xf32, #tpu.memory_space<vmem>>, vector<1x16x128xf32>
    %11 = vector.shape_cast %10 : vector<1x16x128xf32> to vector<16x128xf32>
    %12 = vector.shape_cast %9 : vector<16x128xf32> to vector<1x16x128xf32>
    tpu.vector_store %arg6[%c0_8, %c0_9, %c0_10], %12 {strides = array<i32>} : memref<1x16x128xf32, #tpu.memory_space<vmem>>, vector<1x16x128xf32>,
    %c0_11 = arith.constant 0 : index
    %c0_12 = arith.constant 0 : index
    %c0_13 = arith.constant 0 : index
    %13 = vector.load %arg3[%c0_11, %c0_12, %c0_13] : memref<1x16x128xf32, #tpu.memory_space<vmem>>, vector<1x16x128xf32>
    %14 = vector.shape_cast %13 : vector<1x16x128xf32> to vector<16x128xf32>
    %15 = arith.mulf %14, %1 : vector<16x128xf32>
    %c64_i32_14 = arith.constant 64 : i32
    %16 = tpu.dynamic_rotate %14 by %c64_i32_14 dim 1 : vector<16x128xf32>, i32 -> vector<16x128xf32>
    %17 = arith.mulf %16, %3 : vector<16x128xf32>
    %18 = arith.addf %15, %17 : vector<16x128xf32>
    %c0_15 = arith.constant 0 : index
    %c0_16 = arith.constant 0 : index
    %c0_17 = arith.constant 0 : index
    %19 = vector.load %arg7[%c0_15, %c0_16, %c0_17] : memref<1x16x128xf32, #tpu.memory_space<vmem>>, vector<1x16x128xf32>
    %20 = vector.shape_cast %19 : vector<1x16x128xf32> to vector<16x128xf32>
    %21 = vector.shape_cast %18 : vector<16x128xf32> to vector<1x16x128xf32>
    tpu.vector_store %arg7[%c0_15, %c0_16, %c0_17], %21 {strides = array<i32>} : memref<1x16x128xf32, #tpu.memory_space<vmem>>, vector<1x16x128xf32>,
    return
  }
  func.func @transform_0(%arg0: i32, %arg1: i32) -> (i32, i32, i32) {
    %c0_i32 = arith.constant 0 : i32
    %c0_i32_0 = arith.constant 0 : i32
    return %arg1, %arg0, %c0_i32 : i32, i32, i32
  }
  func.func @transform_1(%arg0: i32, %arg1: i32) -> (i32, i32, i32) {
    %c0_i32 = arith.constant 0 : i32
    %c0_i32_0 = arith.constant 0 : i32
    return %arg1, %arg0, %c0_i32 : i32, i32, i32
  }
  func.func @transform_2(%arg0: i32, %arg1: i32) -> (i32, i32, i32) {
    %c0_i32 = arith.constant 0 : i32
    %c0_i32_0 = arith.constant 0 : i32
    %c0_i32_1 = arith.constant 0 : i32
    return %c0_i32, %arg0, %c0_i32_0 : i32, i32, i32
  }
  func.func @transform_3(%arg0: i32, %arg1: i32) -> (i32, i32, i32) {
    %c0_i32 = arith.constant 0 : i32
    %c0_i32_0 = arith.constant 0 : i32
    %c0_i32_1 = arith.constant 0 : i32
    return %c0_i32, %arg0, %c0_i32_0 : i32, i32, i32
  }
  func.func @transform_4(%arg0: i32, %arg1: i32) -> (i32, i32, i32) {
    %c0_i32 = arith.constant 0 : i32
    %c0_i32_0 = arith.constant 0 : i32
    return %arg1, %arg0, %c0_i32 : i32, i32, i32
  }
  func.func @transform_5(%arg0: i32, %arg1: i32) -> (i32, i32, i32) {
    %c0_i32 = arith.constant 0 : i32
    %c0_i32_0 = arith.constant 0 : i32
    return %arg1, %arg0, %c0_i32 : i32, i32, i32
  }
}

</mosaic_0001>

<llo_original>
// kernel: tpu_custom_call.1
$region0: #{tpu_custom_call.1}
  #allocation0 [shape = 'u32[]', space=smem, size = 0x4, offset = 0x4, fixed_abs, tag = 'smem constant byte address 0x4 - core index']
  #allocation1 [shape = 'u32[72,128]{1,0:T(1,128)}', space=vmem, size = 0x9000, scoped, tag = 'internal scratch']
  %s0 = inlined_call_operand.hbm [shape: f32[2,16,128], index: 0, kind: input, shape index: {}]
  %s1 = inlined_call_operand.hbm [shape: f32[2,16,128], index: 1, kind: input, shape index: {}]
  %s2 = inlined_call_operand.hbm [shape: f32[1,16,128], index: 2, kind: input, shape index: {}]
  %s3 = inlined_call_operand.hbm [shape: f32[1,16,128], index: 3, kind: input, shape index: {}]
  %s4 = inlined_call_operand.hbm [shape: f32[2,16,128], index: 4, kind: output, shape index: {0}]
  %s5 = inlined_call_operand.hbm [shape: f32[2,16,128], index: 5, kind: output, shape index: {1}]
  %6 = xla_tuple %s4, %s5
  %s7 = sld [smem:[#allocation0]]
  $region73: #{tpu_custom_call.1} parent=0
    _
  %s9 = ssub.s32 1, %s7
  %s10 = scalar_select 0, %s9, %s7
  $region1: #{tpu_custom_call.1} parent=0
    #allocation2 [shape = 'u8[16384]{0}', space=vmem, size = 0x4000, scoped, tag = 'input window, operand 0']
    #allocation3 [shape = 's32[2]{0}', space=sflag, size = 0x8, scoped, tag = 'scoped memory for tpu_custom_call.1']
    #allocation4 [shape = 's32[2]{0}', space=sflag, size = 0x8, scoped, tag = 'scoped memory for tpu_custom_call.1']
    #allocation5 [shape = 'u8[16384]{0}', space=vmem, size = 0x4000, scoped, tag = 'input window, operand 1']
    #allocation6 [shape = 's32[2]{0}', space=sflag, size = 0x8, scoped, tag = 'scoped memory for tpu_custom_call.1']
    #allocation7 [shape = 'u8[8192]{0}', space=vmem, size = 0x2000, scoped, tag = 'input window, operand 2, single buffered']
    #allocation8 [shape = 'u8[8192]{0}', space=vmem, size = 0x2000, scoped, tag = 'input window, operand 3, single buffered']
    #allocation9 [shape = 's32[1]{0}', space=sflag, size = 0x4, scoped, tag = 'scoped memory for tpu_custom_call.1']
    #allocation10 [shape = 'u8[16384]{0}', space=vmem, size = 0x4000, scoped, tag = 'output window, operand 0']
    #allocation11 [shape = 'u8[16384]{0}', space=vmem, size = 0x4000, scoped, tag = 'output window, operand 1']
    #allocation12 [shape = 's32[2]{0}', space=sflag, size = 0x8, scoped, tag = 'scoped memory for tpu_custom_call.1']
    %11 = vsyncpa [#allocation3], 0
    %s12 = scalar_lea.sflag [#allocation3], 1
    %13 = vsyncpa %s12, 0
    %14 = vsyncpa [#allocation6], 0
    %s15 = scalar_lea.sflag [#allocation6], 1
    %16 = vsyncpa %s15, 0
    %17 = vsyncpa [#allocation9], 0
    %18 = vsyncpa [#allocation4], 0
    %s19 = scalar_lea.sflag [#allocation4], 1
    %20 = vsyncpa %s19, 0
    %21 = vsyncpa [#allocation12], 0
    %s22 = scalar_lea.sflag [#allocation12], 1
    %23 = vsyncpa %s22, 0
    loop: start=0, step=1, limit=4
    $region2: #{tpu_custom_call.1} parent=1 // loop_pre_header
      _
    $region3: #{tpu_custom_call.1} parent=1 // loop_header
      %s25 = sphi 0, %s29
      %p26 = scmp.ge.s32.totalorder %s25, 4
      %s32 = sphi 0, %s44
      %s33 = sphi 0, %s40
      %s34 = sphi 0, %s32
      %s35 = sphi 0, %s33
      %s36 = sphi 0, %s34
      %s37 = sphi 0, %s35
      %s49 = sphi 0, %s51
      %s52 = sphi 0, %s49
      %s53 = sphi 0, %s52
      %s69 = sphi 0, %s53
      %s77 = sphi 0, %s79
      %s80 = sphi 0, %s77
      %s81 = sphi 0, %s80
      %s97 = sphi 0, %s81
      %s103 = sphi 0, %s105
      %s106 = sphi 0, %s103
      %s107 = sphi 0, %s106
      %s123 = sphi 0, %s107
      %s129 = sphi 0, %s131
      %s132 = sphi 0, %s129
      %s133 = sphi 0, %s132
      %s149 = sphi 0, %s133
      %s157 = sphi 0, %s159
      %s160 = sphi 0, %s157
      %s161 = sphi 0, %s160
      %s177 = sphi 0, %s161
      %s185 = sphi 0, %s187
      %s188 = sphi 0, %s185
      %s189 = sphi 0, %s188
      %s205 = sphi 0, %s189
    $region4: #{tpu_custom_call.1} parent=1 // loop_header_branch
      %28 = sbr.rel (%p26) target = $region8
    $region5: #{tpu_custom_call.1} parent=1 // loop_body
      %s30 = ssub.s32 %s25, 1
      %s31 = ssub.s32 %s25, 2
      %s38 = sadd.s32 1, %s33
      %p39 = scmp.ge.s32.totalorder %s38, 2
      %s40 = scalar_select %p39, 0, %s38
      %s41 = sadd.s32 1, %s32
      %s42 = scalar_select %p39, %s41, %s32
      %p43 = scmp.ge.s32.totalorder %s42, 1
      %s44 = scalar_select %p43, 0, %s42
      %s45 = ssub.s32 %s33, %s40
      %s46 = ssub.s32 %s32, %s44
      %s47 = sor.u32 %s45, %s46
      %p48 = scmp.eq.s32.totalorder %s47, 0
      %s50 = sadd.s32 %s49, 1
      %s51 = scalar_select %p48, %s49, %s50
      %p54 = pneg %p48
      %p55 = scmp.eq.s32.totalorder %s25, 1
      %p56 = por %p54, %p55
      %p57 = scmp.ne.s32.totalorder %s49, %s52
      %p58 = scmp.eq.s32.totalorder %s25, 0
      %p59 = por %p57, %p58
      %p60 = scmp.ne.s32.totalorder %s49, %s52
      %p61 = scmp.eq.s32.totalorder %s30, 1
      %p62 = por %p60, %p61
      %p63 = scmp.ne.s32.totalorder %s52, %s53
      %p64 = scmp.eq.s32.totalorder %s30, 0
      %p65 = por %p63, %p64
      %p66 = scmp.ne.s32.totalorder %s52, %s53
      %p67 = scmp.eq.s32.totalorder %s31, 1
      %p68 = por %p66, %p67
      %p70 = scmp.ne.s32.totalorder %s53, %s69
      %p71 = scmp.eq.s32.totalorder %s31, 0
      %p72 = por %p70, %p71
      %s73 = ssub.s32 %s33, %s40
      %s74 = ssub.s32 %s32, %s44
      %s75 = sor.u32 %s73, %s74
      %p76 = scmp.eq.s32.totalorder %s75, 0
      %s78 = sadd.s32 %s77, 1
      %s79 = scalar_select %p76, %s77, %s78
      %p82 = pneg %p76
      %p83 = scmp.eq.s32.totalorder %s25, 1
      %p84 = por %p82, %p83
      %p85 = scmp.ne.s32.totalorder %s77, %s80
      %p86 = scmp.eq.s32.totalorder %s25, 0
      %p87 = por %p85, %p86
      %p88 = scmp.ne.s32.totalorder %s77, %s80
      %p89 = scmp.eq.s32.totalorder %s30, 1
      %p90 = por %p88, %p89
      %p91 = scmp.ne.s32.totalorder %s80, %s81
      %p92 = scmp.eq.s32.totalorder %s30, 0
      %p93 = por %p91, %p92
      %p94 = scmp.ne.s32.totalorder %s80, %s81
      %p95 = scmp.eq.s32.totalorder %s31, 1
      %p96 = por %p94, %p95
      %p98 = scmp.ne.s32.totalorder %s81, %s97
      %p99 = scmp.eq.s32.totalorder %s31, 0
      %p100 = por %p98, %p99
      %s101 = ssub.s32 %s32, %s44
      %p102 = scmp.eq.s32.totalorder %s101, 0
      %s104 = sadd.s32 %s103, 1
      %s105 = scalar_select %p102, %s103, %s104
      %p108 = pneg %p102
      %p109 = scmp.eq.s32.totalorder %s25, 1
      %p110 = por %p108, %p109
      %p111 = scmp.ne.s32.totalorder %s103, %s106
      %p112 = scmp.eq.s32.totalorder %s25, 0
      %p113 = por %p111, %p112
      %p114 = scmp.ne.s32.totalorder %s103, %s106
      %p115 = scmp.eq.s32.totalorder %s30, 1
      %p116 = por %p114, %p115
      %p117 = scmp.ne.s32.totalorder %s106, %s107
      %p118 = scmp.eq.s32.totalorder %s30, 0
      %p119 = por %p117, %p118
      %p120 = scmp.ne.s32.totalorder %s106, %s107
      %p121 = scmp.eq.s32.totalorder %s31, 1
      %p122 = por %p120, %p121
      %p124 = scmp.ne.s32.totalorder %s107, %s123
      %p125 = scmp.eq.s32.totalorder %s31, 0
      %p126 = por %p124, %p125
      %s127 = ssub.s32 %s32, %s44
      %p128 = scmp.eq.s32.totalorder %s127, 0
      %s130 = sadd.s32 %s129, 1
      %s131 = scalar_select %p128, %s129, %s130
      %p134 = pneg %p128
      %p135 = scmp.eq.s32.totalorder %s25, 1
      %p136 = por %p134, %p135
      %p137 = scmp.ne.s32.totalorder %s129, %s132
      %p138 = scmp.eq.s32.totalorder %s25, 0
      %p139 = por %p137, %p138
      %p140 = scmp.ne.s32.totalorder %s129, %s132
      %p141 = scmp.eq.s32.totalorder %s30, 1
      %p142 = por %p140, %p141
      %p143 = scmp.ne.s32.totalorder %s132, %s133
      %p144 = scmp.eq.s32.totalorder %s30, 0
      %p145 = por %p143, %p144
      %p146 = scmp.ne.s32.totalorder %s132, %s133
      %p147 = scmp.eq.s32.totalorder %s31, 1
      %p148 = por %p146, %p147
      %p150 = scmp.ne.s32.totalorder %s133, %s149
      %p151 = scmp.eq.s32.totalorder %s31, 0
      %p152 = por %p150, %p151
      %s153 = ssub.s32 %s33, %s40
      %s154 = ssub.s32 %s32, %s44
      %s155 = sor.u32 %s153, %s154
      %p156 = scmp.eq.s32.totalorder %s155, 0
      %s158 = sadd.s32 %s157, 1
      %s159 = scalar_select %p156, %s157, %s158
      %p162 = pneg %p156
      %p163 = scmp.eq.s32.totalorder %s25, 1
      %p164 = por %p162, %p163
      %p165 = scmp.ne.s32.totalorder %s157, %s160
      %p166 = scmp.eq.s32.totalorder %s25, 0
      %p167 = por %p165, %p166
      %p168 = scmp.ne.s32.totalorder %s157, %s160
      %p169 = scmp.eq.s32.totalorder %s30, 1
      %p170 = por %p168, %p169
      %p171 = scmp.ne.s32.totalorder %s160, %s161
      %p172 = scmp.eq.s32.totalorder %s30, 0
      %p173 = por %p171, %p172
      %p174 = scmp.ne.s32.totalorder %s160, %s161
      %p175 = scmp.eq.s32.totalorder %s31, 1
      %p176 = por %p174, %p175
      %p178 = scmp.ne.s32.totalorder %s161, %s177
      %p179 = scmp.eq.s32.totalorder %s31, 0
      %p180 = por %p178, %p179
      %s181 = ssub.s32 %s33, %s40
      %s182 = ssub.s32 %s32, %s44
      %s183 = sor.u32 %s181, %s182
      %p184 = scmp.eq.s32.totalorder %s183, 0
      %s186 = sadd.s32 %s185, 1
      %s187 = scalar_select %p184, %s185, %s186
      %p190 = pneg %p184
      %p191 = scmp.eq.s32.totalorder %s25, 1
      %p192 = por %p190, %p191
      %p193 = scmp.ne.s32.totalorder %s185, %s188
      %p194 = scmp.eq.s32.totalorder %s25, 0
      %p195 = por %p193, %p194
      %p196 = scmp.ne.s32.totalorder %s185, %s188
      %p197 = scmp.eq.s32.totalorder %s30, 1
      %p198 = por %p196, %p197
      %p199 = scmp.ne.s32.totalorder %s188, %s189
      %p200 = scmp.eq.s32.totalorder %s30, 0
      %p201 = por %p199, %p200
      %p202 = scmp.ne.s32.totalorder %s188, %s189
      %p203 = scmp.eq.s32.totalorder %s31, 1
      %p204 = por %p202, %p203
      %p206 = scmp.ne.s32.totalorder %s189, %s205
      %p207 = scmp.eq.s32.totalorder %s31, 0
      %p208 = por %p206, %p207
      %p209 = scmp.le.s32.totalorder 1, %s25
      %p210 = scmp.lt.s32.totalorder %s25, 3
      %p211 = pnand %p209, %p210
      %p212 = pneg %p211
      // Predicated region
      $region9: #{tpu_custom_call.1} parent=5 // pred_check
        _
      $region10: #{tpu_custom_call.1} parent=5 // pred_check_branch
        %214 = sbr.rel (%p211) target = $region12
      $region11: #{tpu_custom_call.1} parent=5 // pred_region
        %s215 = ssub.s32 %s25, 1
        // Predicated region
        $region13: #{tpu_custom_call.1} parent=11 // pred_check
          %p216 = pneg %p119
        $region14: #{tpu_custom_call.1} parent=11 // pred_check_branch
          %218 = sbr.rel (%p216) target = $region16
        $region15: #{tpu_custom_call.1} parent=11 // pred_region
          %s219 = smul.u32 2, %s34
          %221 = vsyncadd [#allocation6], 0
          %s222 = smul.addr %s219, 8
          %s223 = scalar_lea.hbm %s2, %s222
          %s224 = sshll.u32 %s223, 4
          %s225 = int_to_ptr.hbm [resolvable:$true] %s224
          %s226 = sshll.u32 [#allocation7], 4
          %s227 = int_to_ptr.vmem [resolvable:$true] %s226
          %232 = dma.hbm_to_vmem [thread:$0]  %s225, 256, %s227, [#allocation6], 128, 128, 8
        $region16: #{tpu_custom_call.1} parent=11 // pred_fallthru
          _
        // Predicated region
        $region17: #{tpu_custom_call.1} parent=11 // pred_check
          %p233 = pneg %p145
        $region18: #{tpu_custom_call.1} parent=11 // pred_check_branch
          %235 = sbr.rel (%p233) target = $region20
        $region19: #{tpu_custom_call.1} parent=11 // pred_region
          %s236 = smul.u32 2, %s34
          %238 = vsyncadd [#allocation9], 0
          %s239 = smul.addr %s236, 8
          %s240 = scalar_lea.hbm %s3, %s239
          %s241 = sshll.u32 %s240, 4
          %s242 = int_to_ptr.hbm [resolvable:$true] %s241
          %s243 = sshll.u32 [#allocation8], 4
          %s244 = int_to_ptr.vmem [resolvable:$true] %s243
          %249 = dma.hbm_to_vmem [thread:$0]  %s242, 256, %s244, [#allocation9], 128, 128, 8
        $region20: #{tpu_custom_call.1} parent=11 // pred_fallthru
          _
      $region12: #{tpu_custom_call.1} parent=5 // pred_fallthru
        _
      %p250 = scmp.lt.s32.totalorder %s25, 2
      // Predicated region
      $region21: #{tpu_custom_call.1} parent=5 // pred_check
        %p251 = pneg %p250
      $region22: #{tpu_custom_call.1} parent=5 // pred_check_branch
        %253 = sbr.rel (%p251) target = $region24
      $region23: #{tpu_custom_call.1} parent=5 // pred_region
        // Predicated region
        $region25: #{tpu_custom_call.1} parent=23 // pred_check
          %p254 = pneg %p59
        $region26: #{tpu_custom_call.1} parent=23 // pred_check_branch
          %256 = sbr.rel (%p254) target = $region28
        $region27: #{tpu_custom_call.1} parent=23 // pred_region
          %s257 = sand.u32 %s49, 1
          %s258 = scalar_lea.sflag [#allocation3], %s257
          %s259 = sand.u32 %s49, 1
          %s260 = smul.addr %s259, 16
          %s261 = scalar_lea.vmem [#allocation2], %s260
          %s262 = smul.u32 2, %s32
          %264 = vsyncadd %s258, 0
          %s265 = smul.addr %s33, 2
          %s266 = sadd.s32 %s262, %s265
          %s267 = smul.addr %s266, 8
          %s268 = scalar_lea.hbm %s0, %s267
          %s269 = sshll.u32 %s268, 4
          %s270 = int_to_ptr.hbm [resolvable:$true] %s269
          %s271 = sshll.u32 %s261, 4
          %s272 = int_to_ptr.vmem [resolvable:$true] %s271
          %277 = dma.hbm_to_vmem [thread:$0]  %s270, 256, %s272, %s258, 128, 128, 8
        $region28: #{tpu_custom_call.1} parent=23 // pred_fallthru
          _
        // Predicated region
        $region29: #{tpu_custom_call.1} parent=23 // pred_check
          %p278 = pneg %p87
        $region30: #{tpu_custom_call.1} parent=23 // pred_check_branch
          %280 = sbr.rel (%p278) target = $region32
        $region31: #{tpu_custom_call.1} parent=23 // pred_region
          %s281 = sand.u32 %s25, 1
          %s282 = scalar_lea.sflag [#allocation6], %s281
          %s283 = sand.u32 %s77, 1
          %s284 = smul.addr %s283, 16
          %s285 = scalar_lea.vmem [#allocation5], %s284
          %s286 = smul.u32 2, %s32
          %288 = vsyncadd %s282, 0
          %s289 = smul.addr %s33, 2
          %s290 = sadd.s32 %s286, %s289
          %s291 = smul.addr %s290, 8
          %s292 = scalar_lea.hbm %s1, %s291
          %s293 = sshll.u32 %s292, 4
          %s294 = int_to_ptr.hbm [resolvable:$true] %s293
          %s295 = sshll.u32 %s285, 4
          %s296 = int_to_ptr.vmem [resolvable:$true] %s295
          %301 = dma.hbm_to_vmem [thread:$0]  %s294, 256, %s296, %s282, 128, 128, 8
        $region32: #{tpu_custom_call.1} parent=23 // pred_fallthru
          _
      $region24: #{tpu_custom_call.1} parent=5 // pred_fallthru
        _
      %p302 = scmp.le.s32.totalorder 1, %s25
      %p303 = scmp.lt.s32.totalorder %s25, 3
      %p304 = pnand %p302, %p303
      %p305 = pneg %p304
      // Predicated region
      $region33: #{tpu_custom_call.1} parent=5 // pred_check
        _
      $region34: #{tpu_custom_call.1} parent=5 // pred_check_branch
        %307 = sbr.rel (%p304) target = $region36
      $region35: #{tpu_custom_call.1} parent=5 // pred_region
        %s308 = ssub.s32 %s25, 1
        %s309 = sand.u32 %s52, 1
        %s310 = scalar_lea.sflag [#allocation3], %s309
        %s311 = sand.u32 %s52, 1
        %s312 = smul.addr %s311, 16
        %s313 = scalar_lea.vmem [#allocation2], %s312
        // Predicated region
        $region37: #{tpu_custom_call.1} parent=35 // pred_check
          %p314 = pneg %p65
        $region38: #{tpu_custom_call.1} parent=35 // pred_check_branch
          %316 = sbr.rel (%p314) target = $region40
        $region39: #{tpu_custom_call.1} parent=35 // pred_region
          %318 = dma.done %s310, 256
        $region40: #{tpu_custom_call.1} parent=35 // pred_fallthru
          _
        %s319 = sand.u32 %s30, 1
        %s320 = scalar_lea.sflag [#allocation6], %s319
        %s321 = sand.u32 %s80, 1
        %s322 = smul.addr %s321, 16
        %s323 = scalar_lea.vmem [#allocation5], %s322
        // Predicated region
        $region41: #{tpu_custom_call.1} parent=35 // pred_check
          %p324 = pneg %p93
        $region42: #{tpu_custom_call.1} parent=35 // pred_check_branch
          %326 = sbr.rel (%p324) target = $region44
        $region43: #{tpu_custom_call.1} parent=35 // pred_region
          %328 = dma.done %s320, 256
        $region44: #{tpu_custom_call.1} parent=35 // pred_fallthru
          _
        // Predicated region
        $region45: #{tpu_custom_call.1} parent=35 // pred_check
          %p329 = pneg %p119
        $region46: #{tpu_custom_call.1} parent=35 // pred_check_branch
          %331 = sbr.rel (%p329) target = $region48
        $region47: #{tpu_custom_call.1} parent=35 // pred_region
          %333 = dma.done [#allocation6], 256
        $region48: #{tpu_custom_call.1} parent=35 // pred_fallthru
          _
        // Predicated region
        $region49: #{tpu_custom_call.1} parent=35 // pred_check
          %p334 = pneg %p145
        $region50: #{tpu_custom_call.1} parent=35 // pred_check_branch
          %336 = sbr.rel (%p334) target = $region52
        $region51: #{tpu_custom_call.1} parent=35 // pred_region
          %338 = dma.done [#allocation9], 256
        $region52: #{tpu_custom_call.1} parent=35 // pred_fallthru
          _
        %s339 = sand.u32 %s52, 1
        %s340 = scalar_lea.sflag [#allocation3], %s339
        %s341 = sand.u32 %s52, 1
        %s342 = smul.addr %s341, 16
        %s343 = scalar_lea.vmem [#allocation2], %s342
        %p344 = pneg %p65
        %p345 = pneg %p62
        %s346 = sand.u32 %s30, 1
        %s347 = scalar_lea.sflag [#allocation6], %s346
        %s348 = sand.u32 %s80, 1
        %s349 = smul.addr %s348, 16
        %s350 = scalar_lea.vmem [#allocation5], %s349
        %p351 = pneg %p93
        %p352 = pneg %p90
        %p353 = pneg %p119
        %p354 = pneg %p116
        %p355 = pneg %p145
        %p356 = pneg %p142
        %p357 = pneg %p173
        %p358 = pneg %p170
        %s359 = sand.u32 %s160, 1
        %s360 = scalar_lea.sflag [#allocation4], %s359
        %s361 = sand.u32 %s160, 1
        %s362 = smul.addr %s361, 16
        %s363 = scalar_lea.vmem [#allocation10], %s362
        %p364 = pneg %p201
        %p365 = pneg %p198
        %s366 = sand.u32 %s188, 1
        %s367 = scalar_lea.sflag [#allocation12], %s366
        %s368 = sand.u32 %s188, 1
        %s369 = smul.addr %s368, 16
        %s370 = scalar_lea.vmem [#allocation11], %s369
        %s371 = smul.u32 2, %s34
        %s372 = smul.u32 2, %s34
        %s373 = smul.u32 2, %s34
        %s374 = smul.u32 2, %s34
        %s375 = smul.u32 2, %s34
        %s376 = smul.u32 2, %s34
        %v377 = vld [vmem:[#allocation7] sm:$0xff]
        %v378 = vld [vmem:[#allocation7 + $0x8] sm:$0xff]
        %v379 = vld [vmem:[#allocation8] sm:$0xff]
        %v380 = vld [vmem:[#allocation8 + $0x8] sm:$0xff]
        %v381 = vld [vmem:[%s313] sm:$0xff]
        %v382 = vld [vmem:[%s313 + $0x8] sm:$0xff]
        %v383 = vmul.f32 %v381, %v377
        %v384 = vmul.f32 %v382, %v378
        %385 = vrot.lane.b32.xlu0 %v381, 64
        %v386 = vpop.permute.xlu0 %385
        %387 = vrot.lane.b32.xlu0 %v382, 64
        %v388 = vpop.permute.xlu0 %387
        %v389 = vmul.f32 %v386, %v379
        %v390 = vmul.f32 %v388, %v380
        %v391 = vadd.f32 %v383, %v389
        %v392 = vadd.f32 %v384, %v390
        %393 = vst [vmem:[%s363] sm:$0xff] %v391
        %394 = vst [vmem:[%s363 + $0x8] sm:$0xff] %v392
        %v395 = vld [vmem:[%s323] sm:$0xff]
        %v396 = vld [vmem:[%s323 + $0x8] sm:$0xff]
        %v397 = vmul.f32 %v395, %v377
        %v398 = vmul.f32 %v396, %v378
        %399 = vrot.lane.b32.xlu0 %v395, 64
        %v400 = vpop.permute.xlu0 %399
        %401 = vrot.lane.b32.xlu0 %v396, 64
        %v402 = vpop.permute.xlu0 %401
        %v403 = vmul.f32 %v400, %v379
        %v404 = vmul.f32 %v402, %v380
        %v405 = vadd.f32 %v397, %v403
        %v406 = vadd.f32 %v398, %v404
        %407 = vst [vmem:[%s370] sm:$0xff] %v405
        %408 = vst [vmem:[%s370 + $0x8] sm:$0xff] %v406
        %s409 = sand.u32 %s160, 1
        %s410 = scalar_lea.sflag [#allocation4], %s409
        %s411 = sand.u32 %s160, 1
        %s412 = smul.addr %s411, 16
        %s413 = scalar_lea.vmem [#allocation10], %s412
        %s414 = sand.u32 %s188, 1
        %s415 = scalar_lea.sflag [#allocation12], %s414
        %s416 = sand.u32 %s188, 1
        %s417 = smul.addr %s416, 16
        %s418 = scalar_lea.vmem [#allocation11], %s417
        // Predicated region
        $region53: #{tpu_custom_call.1} parent=35 // pred_check
          %p419 = pneg %p170
        $region54: #{tpu_custom_call.1} parent=35 // pred_check_branch
          %421 = sbr.rel (%p419) target = $region56
        $region55: #{tpu_custom_call.1} parent=35 // pred_region
          %s422 = smul.u32 2, %s34
          %424 = vsyncadd %s410, 0
          %s425 = smul.addr %s35, 2
          %s426 = sadd.s32 %s422, %s425
          %s427 = smul.addr %s426, 8
          %s428 = scalar_lea.hbm %s4, %s427
          %s429 = sshll.u32 %s413, 4
          %s430 = int_to_ptr.vmem [resolvable:$true] %s429
          %s431 = sshll.u32 %s428, 4
          %s432 = int_to_ptr.hbm [resolvable:$true] %s431
          %437 = dma.vmem_to_hbm [thread:$0]  %s430, 256, %s432, %s410, 128, 128, 8
        $region56: #{tpu_custom_call.1} parent=35 // pred_fallthru
          _
        // Predicated region
        $region57: #{tpu_custom_call.1} parent=35 // pred_check
          %p438 = pneg %p198
        $region58: #{tpu_custom_call.1} parent=35 // pred_check_branch
          %440 = sbr.rel (%p438) target = $region60
        $region59: #{tpu_custom_call.1} parent=35 // pred_region
          %s441 = smul.u32 2, %s34
          %443 = vsyncadd %s415, 0
          %s444 = smul.addr %s35, 2
          %s445 = sadd.s32 %s441, %s444
          %s446 = smul.addr %s445, 8
          %s447 = scalar_lea.hbm %s5, %s446
          %s448 = sshll.u32 %s418, 4
          %s449 = int_to_ptr.vmem [resolvable:$true] %s448
          %s450 = sshll.u32 %s447, 4
          %s451 = int_to_ptr.hbm [resolvable:$true] %s450
          %456 = dma.vmem_to_hbm [thread:$0]  %s449, 256, %s451, %s415, 128, 128, 8
        $region60: #{tpu_custom_call.1} parent=35 // pred_fallthru
          _
      $region36: #{tpu_custom_call.1} parent=5 // pred_fallthru
        _
      %p457 = scmp.le.s32.totalorder 2, %s25
      // Predicated region
      $region61: #{tpu_custom_call.1} parent=5 // pred_check
        %p458 = pneg %p457
      $region62: #{tpu_custom_call.1} parent=5 // pred_check_branch
        %460 = sbr.rel (%p458) target = $region64
      $region63: #{tpu_custom_call.1} parent=5 // pred_region
        %s461 = ssub.s32 %s25, 2
        // Predicated region
        $region65: #{tpu_custom_call.1} parent=63 // pred_check
          %p462 = pneg %p176
        $region66: #{tpu_custom_call.1} parent=63 // pred_check_branch
          %464 = sbr.rel (%p462) target = $region68
        $region67: #{tpu_custom_call.1} parent=63 // pred_region
          %s465 = sand.u32 %s161, 1
          %s466 = scalar_lea.sflag [#allocation4], %s465
          %s467 = sand.u32 %s161, 1
          %s468 = smul.addr %s467, 16
          %s469 = scalar_lea.vmem [#allocation10], %s468
          %471 = dma.done %s466, 256
        $region68: #{tpu_custom_call.1} parent=63 // pred_fallthru
          _
        // Predicated region
        $region69: #{tpu_custom_call.1} parent=63 // pred_check
          %p472 = pneg %p204
        $region70: #{tpu_custom_call.1} parent=63 // pred_check_branch
          %474 = sbr.rel (%p472) target = $region72
        $region71: #{tpu_custom_call.1} parent=63 // pred_region
          %s475 = sand.u32 %s189, 1
          %s476 = scalar_lea.sflag [#allocation12], %s475
          %s477 = sand.u32 %s189, 1
          %s478 = smul.addr %s477, 16
          %s479 = scalar_lea.vmem [#allocation11], %s478
          %481 = dma.done %s476, 256
        $region72: #{tpu_custom_call.1} parent=63 // pred_fallthru
          _
      $region64: #{tpu_custom_call.1} parent=5 // pred_fallthru
        _
    $region6: #{tpu_custom_call.1} parent=1 // loop_footer
      %s29 = sadd.s32 1, %s25
    $region7: #{tpu_custom_call.1} parent=1 // loop_footer_branch
      %24 = sbr.rel target = $region3
    $region8: #{tpu_custom_call.1} parent=1 // loop_exit
      _
    %482 = vsyncpa [#allocation3], 1
    %s483 = scalar_lea.sflag [#allocation3], 1
    %484 = vsyncpa %s483, 1
    %485 = vsyncpa [#allocation6], 1
    %s486 = scalar_lea.sflag [#allocation6], 1
    %487 = vsyncpa %s486, 1
    %488 = vsyncpa [#allocation9], 1
    %489 = vsyncpa [#allocation4], 1
    %s490 = scalar_lea.sflag [#allocation4], 1
    %491 = vsyncpa %s490, 1
    %492 = vsyncpa [#allocation12], 1
    %s493 = scalar_lea.sflag [#allocation12], 1
    %494 = vsyncpa %s493, 1

</llo_original>
